<compile_context>
chip_gen: v7x
topology: tpu7x:2x2x1
jax: 0.10.0
libtpu: 0.0.40
codegen_flags: <defaults>
</compile_context>

<pallas_src>
import jax
import jax.numpy as jnp
from jax.experimental import pallas as pl
from jax.experimental.pallas import tpu as pltpu

IN_FEATURES = 500
OUT_FEATURES = 1
SUBLANE = 8
MAX_TILE_B = 2048   # 2048*500*4 B ~= 3.9 MiB per x buffer; 2 buffers < 16 MiB (v5e default)


def _round_up(n, m):
    return pl.cdiv(n, m) * m


def net_kernel(x_ref, w_ref, b_ref, o_ref):
    # x: (TB, F) VMEM   w: (1, F) VMEM (resident)   b: (1,) SMEM   o: (TB, 1)
    x = x_ref[...]
    w = w_ref[...]
    b = b_ref[0]

    # Linear with OUT_FEATURES == 1: VPU elementwise multiply + XLU lane
    # reduce (keeps the MXU out of an N=1 matmul).
    y = jnp.sum(x * w, axis=1, keepdims=True) + b            # (TB, 1) f32

    # log_softmax over dim=1 (stable general form; with a single logit the
    # result is exactly zero, matching F.log_softmax).
    m = jnp.max(y, axis=1, keepdims=True)
    lse = m + jnp.log(jnp.sum(jnp.exp(y - m), axis=1, keepdims=True))
    o_ref[...] = (y - lse).astype(o_ref.dtype)


def net_forward(x, weight, bias, *, tile_b=MAX_TILE_B):
    batch, in_f = x.shape
    out_f = weight.shape[0]

    # --- batch tile selection (no wrapper-side copies of x) ---------------
    if batch <= SUBLANE:
        tb = batch                       # block == full dim is always legal
    else:
        tb = min(tile_b, _round_up(batch, SUBLANE))
        # Prefer >= 2 grid steps so the "parallel" batch axis can shard
        # across both TensorCores on v7x (tiles stay a multiple of 8).
        if pl.cdiv(batch, tb) < 2 and batch > 4 * SUBLANE:
            tb = _round_up(pl.cdiv(batch, 2), SUBLANE)

    grid = (pl.cdiv(batch, tb),)

    b1d = bias.reshape(out_f).astype(jnp.float32)

    cost = pl.CostEstimate(
        flops=2 * batch * in_f * out_f,
        transcendentals=2 * batch * out_f,           # exp + log per row
        bytes_accessed=(batch * in_f * 4             # x reads (dominant cost)
                        + out_f * in_f * 4           # weight
                        + out_f * 4                  # bias
                        + batch * out_f * 4),        # output writes
    )

    out = pl.pallas_call(
        net_kernel,
        out_shape=jax.ShapeDtypeStruct((batch, out_f), jnp.float32),
        grid_spec=pltpu.PrefetchScalarGridSpec(
            num_scalar_prefetch=0,
            grid=grid,
            in_specs=[
                # x: tiled along batch; tail block (if any) is partial and
                # masked by Pallas.  Last dim == full array dim -> no padding.
                pl.BlockSpec((tb, in_f), lambda i: (i, 0)),
                # weight: constant index_map -> stays resident in VMEM.
                pl.BlockSpec((out_f, in_f), lambda i: (0, 0)),
                # bias: single scalar, lives in SMEM (no VMEM stream).
                pl.BlockSpec(memory_space=pltpu.MemorySpace.SMEM),
            ],
            out_specs=pl.BlockSpec((tb, out_f), lambda i: (i, 0)),
        ),
        compiler_params=pltpu.CompilerParams(
            dimension_semantics=("parallel",)),
        cost_estimate=cost,
    )(x, weight, b1d)

    return out


if __name__ == "__main__":
    key = jax.random.PRNGKey(0)
    k_x, k_w, k_b = jax.random.split(key, 3)

    batch = 8
    # Deterministic parameter init (PyTorch-style uniform(-1/sqrt(fan_in), ...))
    bound = 1.0 / (IN_FEATURES ** 0.5)
    weight = jax.random.uniform(
        k_w, (OUT_FEATURES, IN_FEATURES), jnp.float32, -bound, bound)
    bias = jax.random.uniform(
        k_b, (OUT_FEATURES,), jnp.float32, -bound, bound)

    x = jax.random.normal(k_x, (batch, IN_FEATURES), jnp.float32)

    out = jax.block_until_ready(net_forward(x, weight, bias))

    # Reference check in plain JAX
    y_ref = x @ weight.T + bias
    ref = y_ref - jax.scipy.special.logsumexp(y_ref, axis=1, keepdims=True)
    assert out.shape == (batch, OUT_FEATURES)
    assert jnp.allclose(out, ref, atol=1e-5), "mismatch vs reference"

    print("KERNEL_OK")
</pallas_src>

<mosaic_0001>
module attributes {stable_mosaic.version = 11 : i64} {
  func.func @net_kernel(%arg0: i32, %arg1: memref<8x500xf32, #tpu.memory_space<vmem>>, %arg2: memref<1x500xf32, #tpu.memory_space<vmem>>, %arg3: memref<1xf32, #tpu.memory_space<smem>>, %arg4: memref<8x1xf32, #tpu.memory_space<vmem>>) attributes {dimension_semantics = [#tpu.dimension_semantics<parallel>], iteration_bounds = array<i64: 1>, scalar_prefetch = 0 : i64, scratch_operands = 0 : i64, tpu.core_type = #tpu.core_type<tc>, window_params = [{transform_indices = @transform_0, window_bounds = array<i64: 8, 500>}, {pipeline_mode = #tpu.pipeline_mode<synchronous>, transform_indices = @transform_1, window_bounds = array<i64: 1, 500>}, {transform_indices = @transform_2, window_bounds = array<i64: 1>}, {transform_indices = @transform_3, window_bounds = array<i64: 8, 1>}]} {
    %c0 = arith.constant 0 : index
    %c0_0 = arith.constant 0 : index
    %0 = vector.load %arg1[%c0, %c0_0] : memref<8x500xf32, #tpu.memory_space<vmem>>, vector<8x500xf32>
    %c0_1 = arith.constant 0 : index
    %c0_2 = arith.constant 0 : index
    %1 = vector.load %arg2[%c0_1, %c0_2] : memref<1x500xf32, #tpu.memory_space<vmem>>, vector<1x500xf32>
    %c0_3 = arith.constant 0 : index
    %2 = memref.load %arg3[%c0_3] : memref<1xf32, #tpu.memory_space<smem>>
    %3 = vector.broadcast %1 : vector<1x500xf32> to vector<8x500xf32>
    %4 = arith.mulf %0, %3 : vector<8x500xf32>
    %cst = arith.constant dense<0.000000e+00> : vector<8xf32>
    %5 = vector.multi_reduction <add>, %4, %cst [1] : vector<8x500xf32> to vector<8xf32>
    %6 = vector.shape_cast %5 : vector<8xf32> to vector<8x1xf32>
    %7 = vector.broadcast %2 : f32 to vector<8x1xf32>
    %8 = arith.addf %6, %7 : vector<8x1xf32>
    %cst_4 = arith.constant dense<0xFF800000> : vector<8xf32>
    %9 = vector.multi_reduction <maximumf>, %8, %cst_4 [1] : vector<8x1xf32> to vector<8xf32>
    %10 = vector.shape_cast %9 : vector<8xf32> to vector<8x1xf32>
    %11 = arith.subf %8, %10 : vector<8x1xf32>
    %12 = math.exp %11 : vector<8x1xf32>
    %cst_5 = arith.constant dense<0.000000e+00> : vector<8xf32>
    %13 = vector.multi_reduction <add>, %12, %cst_5 [1] : vector<8x1xf32> to vector<8xf32>
    %14 = vector.shape_cast %13 : vector<8xf32> to vector<8x1xf32>
    %15 = math.log %14 : vector<8x1xf32>
    %16 = arith.addf %10, %15 : vector<8x1xf32>
    %17 = arith.subf %8, %16 : vector<8x1xf32>
    %c0_6 = arith.constant 0 : index
    %c0_7 = arith.constant 0 : index
    %18 = vector.load %arg4[%c0_6, %c0_7] : memref<8x1xf32, #tpu.memory_space<vmem>>, vector<8x1xf32>
    tpu.vector_store %arg4[%c0_6, %c0_7], %17 {strides = array<i32>} : memref<8x1xf32, #tpu.memory_space<vmem>>, vector<8x1xf32>,
    return
  }
  func.func @transform_0(%arg0: i32) -> (i32, i32) {
    %c0_i32 = arith.constant 0 : i32
    %c0_i32_0 = arith.constant 0 : i32
    return %arg0, %c0_i32 : i32, i32
  }
  func.func @transform_1(%arg0: i32) -> (i32, i32) {
    %c0_i32 = arith.constant 0 : i32
    %c0_i32_0 = arith.constant 0 : i32
    %c0_i32_1 = arith.constant 0 : i32
    return %c0_i32, %c0_i32_0 : i32, i32
  }
  func.func @transform_2(%arg0: i32) -> i32 {
    %c0_i32 = arith.constant 0 : i32
    %c0_i32_0 = arith.constant 0 : i32
    return %c0_i32 : i32
  }
  func.func @transform_3(%arg0: i32) -> (i32, i32) {
    %c0_i32 = arith.constant 0 : i32
    %c0_i32_0 = arith.constant 0 : i32
    return %arg0, %c0_i32 : i32, i32
  }
}

</mosaic_0001>

<llo_original>
// kernel: tpu_custom_call.1
$region0: #{tpu_custom_call.1}
  #allocation0 [shape = 'u32[]', space=smem, size = 0x4, offset = 0x4, fixed_abs, tag = 'smem constant byte address 0x4 - core index']
  #allocation1 [shape = 'u32[144,128]{1,0:T(1,128)}', space=vmem, size = 0x12000, scoped, tag = 'internal scratch']
  #allocation2 [shape = 'f32[1]{0:T(128)S(6)}', space=smem, size = 0x200, scoped, tag = 'scoped memory for tpu_custom_call.1']
  %s0 = inlined_call_operand.hbm [shape: f32[8,500], index: 0, kind: input, shape index: {}]
  %s1 = inlined_call_operand.vmem [shape: f32[1,500], index: 1, kind: input, shape index: {}]
  %s2 = inlined_call_operand.<no memory space> [shape: f32[1], index: 2, kind: input, shape index: {}]
  %s3 = inlined_call_operand.vmem [shape: f32[8,1], index: 3, kind: output, shape index: {}]
  %s4 = sld [smem:[#allocation0]]
  $region26: #{tpu_custom_call.1} parent=0
    _
  %s6 = ssub.s32 1, %s4
  %s7 = scalar_select 0, %s6, %s4
  %8 = sst [smem:[#allocation2]] %s2
  $region1: #{tpu_custom_call.1} parent=0
    #allocation3 [shape = 'u8[16384]{0}', space=vmem, size = 0x4000, scoped, tag = 'input window, operand 0, single buffered']
    #allocation4 [shape = 's32[1]{0}', space=sflag, size = 0x4, scoped, tag = 'scoped memory for tpu_custom_call.1']
    %9 = vsyncpa [#allocation4], 0
    // Predicated region
    $region2: #{tpu_custom_call.1} parent=1 // pred_check
      _
    $region3: #{tpu_custom_call.1} parent=1 // pred_check_branch
      %11 = sbr.rel (0) target = $region5
    $region4: #{tpu_custom_call.1} parent=1 // pred_region
      %s13 = ssub.s32 512, 512
      %14 = vsyncadd [#allocation4], %s13
      %s16 = sshll.u32 [#allocation3], 4
      %s17 = int_to_ptr.vmem [resolvable:$true] %s16
      %19 = dma.hbm_to_vmem [thread:$0]  %s0, 512, %s17, [#allocation4]
    $region5: #{tpu_custom_call.1} parent=1 // pred_fallthru
      _
    // Predicated region
    $region6: #{tpu_custom_call.1} parent=1 // pred_check
      _
    $region7: #{tpu_custom_call.1} parent=1 // pred_check_branch
      %21 = sbr.rel (0) target = $region9
    $region8: #{tpu_custom_call.1} parent=1 // pred_region
      _
    $region9: #{tpu_custom_call.1} parent=1 // pred_fallthru
      _
    // Predicated region
    $region10: #{tpu_custom_call.1} parent=1 // pred_check
      _
    $region11: #{tpu_custom_call.1} parent=1 // pred_check_branch
      %23 = sbr.rel (0) target = $region13
    $region12: #{tpu_custom_call.1} parent=1 // pred_region
      _
    $region13: #{tpu_custom_call.1} parent=1 // pred_fallthru
      _
    // Predicated region
    $region14: #{tpu_custom_call.1} parent=1 // pred_check
      _
    $region15: #{tpu_custom_call.1} parent=1 // pred_check_branch
      %25 = sbr.rel (0) target = $region17
    $region16: #{tpu_custom_call.1} parent=1 // pred_region
      %26 = dma.done [#allocation4], 512
    $region17: #{tpu_custom_call.1} parent=1 // pred_fallthru
      _
    %v27 = vld [vmem:[#allocation3] sm:$0xff]
    %v28 = vld [vmem:[#allocation3 + $0x8] sm:$0xff]
    %v29 = vld [vmem:[#allocation3 + $0x10] sm:$0xff]
    %v30 = vld [vmem:[#allocation3 + $0x18] sm:$0xff]
    %v31 = vld [vmem:[%s1] sm:$0xf]
    %s32 = sld [smem:[#allocation2]]
    %v34 = vlaneseq
    %v35 = vshrl.u32 %v34, 7
    %v36 = vsub.s32 0, %v35
    %v37 = vrot.slane %v31, %v36
    %v38 = vlaneseq
    %v39 = vshrl.u32 %v38, 7
    %v40 = vsub.s32 1, %v39
    %v41 = vrot.slane %v31, %v40
    %v42 = vlaneseq
    %v43 = vshrl.u32 %v42, 7
    %v44 = vsub.s32 2, %v43
    %v45 = vrot.slane %v31, %v44
    %v46 = vlaneseq
    %v47 = vshrl.u32 %v46, 7
    %v48 = vsub.s32 3, %v47
    %v49 = vrot.slane %v31, %v48
    %v54 = vmul.f32 %v27, %v37
    %v55 = vmul.f32 %v28, %v41
    %v56 = vmul.f32 %v29, %v45
    %v57 = vmul.f32 %v30, %v49
    %v58 = vadd.f32 %v54, %v55
    %v59 = vadd.f32 %v58, %v56
    %vm60 = vcmask 949248
    %v61 = vsel %vm60, %v57, 0.0
    %v62 = vadd.f32 %v59, %v61
    %63 = vadd.xlane.f32.xlu0 %v62
    %v64 = vpop.xlane.xlu0 %63
    %v65 = vstv %s32
    %v66 = vadd.f32 %v64, %v65
    %v67 = vsub.f32 %v66, %v66
    %v68 = vmul.f32 %v67, 1.442695
    %v69 = vpow.pop %v68
    %v70 = vadd.f32 %v69, 0.0
    %v71 = vlog2.pop %v70
    %v72 = vmul.f32 %v71, 0.6931472
    %v73 = vadd.f32 %v66, %v72
    %v74 = vsub.f32 %v66, %v73
    %vm75 = vcmask 7168
    %76 = vst.msk [vmem:[%s3] sm:$0xff] %vm75, %v74
    // Predicated region
    $region18: #{tpu_custom_call.1} parent=1 // pred_check
      _
    $region19: #{tpu_custom_call.1} parent=1 // pred_check_branch
      %78 = sbr.rel (0) target = $region21
    $region20: #{tpu_custom_call.1} parent=1 // pred_region
      _
    $region21: #{tpu_custom_call.1} parent=1 // pred_fallthru
      _
    // Predicated region
    $region22: #{tpu_custom_call.1} parent=1 // pred_check
      _
    $region23: #{tpu_custom_call.1} parent=1 // pred_check_branch
      %80 = sbr.rel (0) target = $region25
    $region24: #{tpu_custom_call.1} parent=1 // pred_region
      _
    $region25: #{tpu_custom_call.1} parent=1 // pred_fallthru
      _
    %81 = vsyncpa [#allocation4], 1

</llo_original>
